<compile_context>
chip_gen: v5e
topology: v5e:2x2
jax: 0.10.0
libtpu: 0.0.40
codegen_flags: <defaults>
</compile_context>

<pallas_src>
import functools

import jax
import jax.numpy as jnp
from jax.experimental import pallas as pl
from jax.experimental.pallas import tpu as pltpu


# ---------------------------------------------------------------------------
# Fused Attention + Fusion kernel.
#
# Grid: (nt, bt, st); n is outermost, b and s are sequential ("arbitrary")
# unless the parallel split had to move to b/s (v7x fallback).
# Refs:
#   q_ref     (TB, C, TS)     query tile (channel-major, spatial in lanes)
#   s_ref     (TN, Sp, C)     support tile (channels-last)
#   w_att_ref (C, C)          attention linear weight
#   b_att_ref (1, C)          attention linear bias
#   o_ref     (TN, TB, C, TS) class-major fused output tile
#   wb_sc     (TN, C, 1)      VMEM scratch: cached channel gate
# ---------------------------------------------------------------------------
def _aaf_fused_kernel(q_ref, s_ref, w_att_ref, b_att_ref, o_ref, wb_sc,
                      *, cache_gate):
    def _compute_gate():
        # Global average pool over spatial (sublane axis -> cheap reduce).
        pooled = jnp.mean(s_ref[...].astype(jnp.float32), axis=1)     # (TN, C)
        # Linear + sigmoid channel gate (tiny matmul on the MXU).
        lin = jnp.dot(pooled, w_att_ref[...],
                      preferred_element_type=jnp.float32)              # (TN, C)
        gate = jax.nn.sigmoid(lin + b_att_ref[...])                    # (TN, C)
        wb_sc[...] = gate[:, :, None]                                  # (TN, C, 1)

    if cache_gate:
        # Gate depends only on the n-tile; b/s are sequential ("arbitrary"),
        # so computing at the first (b, s) step of each n-tile and caching in
        # persistent VMEM scratch is valid.
        @pl.when((pl.program_id(1) == 0) & (pl.program_id(2) == 0))
        def _():
            _compute_gate()
    else:
        # b or s carries the megacore-parallel split: caching across steps
        # would be unsafe, so recompute (cost is negligible on a store-bound
        # kernel).
        _compute_gate()

    # Fusion: class/instance-specific Hadamard reweighting of the query tile.
    # f32 multiply, cast on store (bf16 output halves HBM writeback; v5e's VPU
    # has no bf16 ALU so compute stays f32).  Lane broadcast of the (TN, C, 1)
    # gate is free filler (3 of 4 VALU slots idle).
    w = wb_sc[...]                                                     # (TN, C, 1)
    o_ref[...] = (w[:, None, :, :]
                  * q_ref[...][None, :, :, :].astype(jnp.float32)
                  ).astype(o_ref.dtype)


# ---------------------------------------------------------------------------
# Generation-aware knobs.
# ---------------------------------------------------------------------------
def _tpu_generation():
    """Return (num_tensorcores, vmem_limit_bytes, vmem_budget_bytes)."""
    kind = ""
    try:
        kind = (jax.devices()[0].device_kind or "").lower()
    except Exception:  # pragma: no cover - defensive
        pass
    is_v7 = "v7" in kind
    if is_v7:
        # v7x: 64 MiB physical VMEM per TC, 2 TCs per chip.
        return 2, 44 * 1024 * 1024, 28 * 1024 * 1024
    # v5e / v6e: 128 MiB physical VMEM, single TC.
    return 1, 80 * 1024 * 1024, 56 * 1024 * 1024


def _choose_tiles(N, B, C, S_pad, Sp, *, in_itemsize, out_itemsize,
                  budget_bytes, num_tc):
    """Largest (TN, TB, TS) divisor tiles fitting the VMEM budget.

    On multi-TC parts (v7x) prefer candidates with >= num_tc tiles along some
    axis (N first); on single-TC parts simply pick the biggest block.
    TS is always a lane-dense multiple of 128.
    """
    def vmem_est(tn, tb, ts):
        return (tb * C * ts * in_itemsize * 2          # query input (dbl-buf)
                + tn * Sp * C * in_itemsize * 2        # support input
                + (C * C + 8 * max(C, 128)) * 4 * 2    # attention params
                + tn * tb * C * ts * out_itemsize * 2  # output
                + tn * C * 128 * 4)                    # gate scratch (lane-padded)

    n_divs = [d for d in range(N, 0, -1) if N % d == 0]
    b_divs = [d for d in range(B, 0, -1) if B % d == 0]
    s_divs = [d for d in range(S_pad, 0, -1) if S_pad % d == 0 and d % 128 == 0]
    if not s_divs:               # defensive; S_pad is always a multiple of 128
        s_divs = [S_pad]

    cands = [(tn, tb, ts)
             for tn in n_divs for tb in b_divs for ts in s_divs
             if vmem_est(tn, tb, ts) <= budget_bytes]
    if not cands:
        # Smallest expressible tile; vmem_limit_bytes is set well above the
        # soft budget so this still has headroom in practice.
        cands = [(1, 1, min(s_divs))]

    def score(c):
        tn, tb, ts = c
        nt, bt, st = N // tn, B // tb, S_pad // ts
        if num_tc >= 2:
            split_ok = 1 if max(nt, bt, st) >= num_tc else 0
            n_split = 1 if nt >= num_tc else 0
            return (split_ok, n_split, tn * tb * ts, ts)
        return (tn * tb * ts, ts)

    tn, tb, ts = max(cands, key=score)
    return int(tn), int(tb), int(ts)


# ---------------------------------------------------------------------------
# pallas_call wrapper (one call per feature level).
# ---------------------------------------------------------------------------
def aaf_fused(query_flat, support_cl, w_att, b_att, out_dtype):
    """Fused attention+fusion.

    query_flat : (B, C, S_pad)  channel-major query features, S_pad % 128 == 0
    support_cl : (N, Sp, C)     channels-last support features
    Returns    : (N, B, C, S_pad) class-major fused query features (out_dtype).
    """
    B, C, S = query_flat.shape
    N, Sp, Cs = support_cl.shape
    assert C == Cs
    assert S % 128 == 0, "caller must pad the spatial axis to a multiple of 128"

    num_tc, vmem_limit, budget = _tpu_generation()
    TN, TB, TS = _choose_tiles(
        N, B, C, S, Sp,
        in_itemsize=query_flat.dtype.itemsize,
        out_itemsize=jnp.dtype(out_dtype).itemsize,
        budget_bytes=budget, num_tc=num_tc)
    nt, bt, st = N // TN, B // TB, S // TS

    # Parallel-axis selection.  Default: n parallel (gate cache valid since b/s
    # stay sequential).  On v7x, if N cannot provide >= 2 tiles, move the
    # parallel split to b or s and recompute the gate every step.
    dims = ("parallel", "arbitrary", "arbitrary")
    cache_gate = True
    if num_tc >= 2 and nt < num_tc:
        if bt >= num_tc:
            dims = ("arbitrary", "parallel", "arbitrary")
            cache_gate = False
        elif st >= num_tc:
            dims = ("arbitrary", "arbitrary", "parallel")
            cache_gate = False

    kernel = functools.partial(_aaf_fused_kernel, cache_gate=cache_gate)

    return pl.pallas_call(
        kernel,
        out_shape=jax.ShapeDtypeStruct((N, B, C, S), out_dtype),
        grid_spec=pltpu.PrefetchScalarGridSpec(
            num_scalar_prefetch=0,
            grid=(nt, bt, st),
            in_specs=[
                pl.BlockSpec((TB, C, TS), lambda n, b, s: (b, 0, s)),
                pl.BlockSpec((TN, Sp, C), lambda n, b, s: (n, 0, 0)),
                pl.BlockSpec((C, C), lambda n, b, s: (0, 0)),
                pl.BlockSpec((1, C), lambda n, b, s: (0, 0)),
            ],
            out_specs=pl.BlockSpec((TN, TB, C, TS),
                                   lambda n, b, s: (n, b, 0, s)),
            scratch_shapes=[pltpu.VMEM((TN, C, 1), jnp.float32)],
        ),
        compiler_params=pltpu.CompilerParams(
            dimension_semantics=dims,
            vmem_limit_bytes=vmem_limit,
        ),
    )(query_flat, support_cl, w_att, b_att.reshape(1, C))


# ---------------------------------------------------------------------------
# Per-feature-level forward + whole-pyramid jit (single dispatch for all levels).
# ---------------------------------------------------------------------------
def _aaf_level(q, s, w_att, b_att, out_dtype):
    B, C, H, W = q.shape
    N, Cs, Hp, Wp = s.shape
    assert C == Cs
    # Alignment: IDENTITY mode (ALIGN_FIRST=True), pass-through.
    # TODO(synk): non-identity alignment modes (e.g. similarity alignment) not implemented.
    S = H * W
    S_pad = ((S + 127) // 128) * 128
    q_flat = q.reshape(B, C, S)
    if S_pad != S:
        # Pad the spatial/lane axis so every output vst is unmasked lane-dense.
        q_flat = jnp.pad(q_flat, ((0, 0), (0, 0), (0, S_pad - S)))
    # Channels-last support so pooling is a sublane reduction and the (N, C)
    # gate comes out lane-dense in C.
    s_cl = s.reshape(N, C, Hp * Wp).transpose(0, 2, 1)
    fused = aaf_fused(q_flat, s_cl, w_att, b_att, out_dtype)   # (N, B, C, S_pad)
    if S_pad != S:
        fused = fused[..., :S]
    return fused.reshape(N, B, C, H, W)                        # class-major


@functools.partial(jax.jit, static_argnames=("out_dtype",))
def _aaf_levels(query_features, support_features, w_att, b_att, out_dtype):
    return [_aaf_level(q, s, w_att, b_att, out_dtype)
            for q, s in zip(query_features, support_features)]


# ---------------------------------------------------------------------------
# AAFModule.forward equivalent (glue in plain JAX / Python).
# ---------------------------------------------------------------------------
def aaf_module_forward(query_features, support_features, support_labels,
                       w_att, b_att, out_dtype=jnp.bfloat16):
    """
    query_features:   List[(B, C, H, W)]
    support_features: List[(N, C, H', W')]   N = n_ways * K_shot (here K_shot=1)
    support_labels:   list of int, one label per support image
    Returns: Dict[class -> List[(B, C, H, W)]]   class-specific query features.
    """
    labels = sorted(set(support_labels))
    n_ways = len(labels)
    # The original grouping reshape(B, n_ways, ...) is only valid for K_shot=1
    # and assumes support rows are ordered to match sorted(labels).
    assert list(support_labels) == labels, (
        "support rows must be ordered by sorted class label (K_shot=1)")
    # TODO(synk): K_shot > 1 grouping not implemented (original reshape only valid for K_shot=1).
    for q, s in zip(query_features, support_features):
        assert q.shape[1] == s.shape[1] and s.shape[0] == n_ways

    fused_levels = _aaf_levels(tuple(query_features), tuple(support_features),
                               w_att, b_att, out_dtype=out_dtype)

    query_features_dict = {c: [] for c in labels}
    for fused in fused_levels:                         # (N, B, C, H, W)
        for id_class, c in enumerate(labels):
            # Class-major layout -> contiguous leading-axis slice (cheap).
            query_features_dict[c].append(fused[id_class])
    return query_features_dict


if __name__ == "__main__":
    key = jax.random.PRNGKey(0)
    k_q0, k_q1, k_s0, k_s1, k_w, k_b = jax.random.split(key, 6)

    B, C = 2, 32
    n_ways, K_shot = 4, 1
    N = n_ways * K_shot
    support_labels = [1, 2, 3, 4]       # one class per support image (K_shot=1)

    # Two pyramid levels: one lane-aligned (16x16) and one awkward (7x7, S=49)
    # to exercise the lane-padding path.
    query0 = jax.random.normal(k_q0, (B, C, 16, 16), dtype=jnp.float32)
    query1 = jax.random.normal(k_q1, (B, C, 7, 7), dtype=jnp.float32)
    support0 = jax.random.normal(k_s0, (N, C, 8, 8), dtype=jnp.float32)
    support1 = jax.random.normal(k_s1, (N, C, 4, 4), dtype=jnp.float32)

    # Deterministic attention-module parameters (C x C linear + bias).
    w_att = (jax.random.normal(k_w, (C, C), dtype=jnp.float32) *
             (1.0 / jnp.sqrt(C)))
    b_att = jax.random.normal(k_b, (C,), dtype=jnp.float32) * 0.01

    out_dict = aaf_module_forward([query0, query1], [support0, support1],
                                  support_labels, w_att, b_att)

    # Block on all results.
    for c, feats in out_dict.items():
        for f in feats:
            jax.block_until_ready(f)

    # Sanity check against a pure-JAX reference (f32 compute, bf16 output ->
    # loosened tolerance).
    for lvl, (query, support) in enumerate([(query0, support0),
                                            (query1, support1)]):
        pooled_ref = support.reshape(N, C, -1).mean(-1)
        w_ref = jax.nn.sigmoid(pooled_ref @ w_att + b_att)
        fused_ref = query[:, None] * w_ref[None, :, :, None, None]  # (B,N,C,H,W)
        for idx, c in enumerate(sorted(set(support_labels))):
            got = out_dict[c][lvl].astype(jnp.float32)
            assert got.shape == fused_ref[:, idx].shape, got.shape
            assert jnp.allclose(got, fused_ref[:, idx], atol=2e-2, rtol=2e-2), (
                f"mismatch at level {lvl}, class {c}")

    print("KERNEL_OK")
</pallas_src>

<mosaic_0001>
module attributes {stable_mosaic.version = 11 : i64} {
  func.func @_aaf_fused_kernel(%arg0: i32, %arg1: i32, %arg2: i32, %arg3: memref<2x32x256xf32, #tpu.memory_space<vmem>>, %arg4: memref<4x64x32xf32, #tpu.memory_space<vmem>>, %arg5: memref<32x32xf32, #tpu.memory_space<vmem>>, %arg6: memref<1x32xf32, #tpu.memory_space<vmem>>, %arg7: memref<4x2x32x256xbf16, #tpu.memory_space<vmem>>, %arg8: memref<4x32x1xf32, #tpu.memory_space<vmem>>) attributes {dimension_semantics = [#tpu.dimension_semantics<parallel>, #tpu.dimension_semantics<arbitrary>, #tpu.dimension_semantics<arbitrary>], iteration_bounds = array<i64: 1, 1, 1>, scalar_prefetch = 0 : i64, scratch_operands = 1 : i64, tpu.core_type = #tpu.core_type<tc>, window_params = [{transform_indices = @transform_0, window_bounds = array<i64: 2, 32, 256>}, {transform_indices = @transform_1, window_bounds = array<i64: 4, 64, 32>}, {pipeline_mode = #tpu.pipeline_mode<synchronous>, transform_indices = @transform_2, window_bounds = array<i64: 32, 32>}, {pipeline_mode = #tpu.pipeline_mode<synchronous>, transform_indices = @transform_3, window_bounds = array<i64: 1, 32>}, {transform_indices = @transform_4, window_bounds = array<i64: 4, 2, 32, 256>}]} {
    %c0_i32 = arith.constant 0 : i32
    %0 = arith.cmpi eq, %arg1, %c0_i32 : i32
    %c0_i32_0 = arith.constant 0 : i32
    %1 = arith.cmpi eq, %arg2, %c0_i32_0 : i32
    %2 = arith.andi %0, %1 : i1
    %3 = arith.extui %2 : i1 to i32
    %c0_i32_1 = arith.constant 0 : i32
    %4 = arith.cmpi ne, %3, %c0_i32_1 : i32
    scf.if %4 {
      %c0_11 = arith.constant 0 : index
      %c0_12 = arith.constant 0 : index
      %c0_13 = arith.constant 0 : index
      %14 = vector.load %arg4[%c0_11, %c0_12, %c0_13] : memref<4x64x32xf32, #tpu.memory_space<vmem>>, vector<4x64x32xf32>
      %cst = arith.constant dense<0.000000e+00> : vector<4x32xf32>
      %15 = vector.multi_reduction <add>, %14, %cst [1] : vector<4x64x32xf32> to vector<4x32xf32>
      %cst_14 = arith.constant 6.400000e+01 : f32
      %16 = vector.broadcast %cst_14 : f32 to vector<4x32xf32>
      %17 = arith.divf %15, %16 : vector<4x32xf32>
      %c0_15 = arith.constant 0 : index
      %c0_16 = arith.constant 0 : index
      %18 = vector.load %arg5[%c0_15, %c0_16] : memref<32x32xf32, #tpu.memory_space<vmem>>, vector<32x32xf32>
      %cst_17 = arith.constant dense<0.000000e+00> : vector<4x32xf32>
      %19 = tpu.matmul %17, %18, %cst_17 {dimension_numbers = #tpu.dot_dimension_numbers<[1], [0], [0], [1], [0, 0, 1, 1], [], []>} : vector<4x32xf32>, vector<32x32xf32>, vector<4x32xf32> -> vector<4x32xf32>
      %c0_18 = arith.constant 0 : index
      %c0_19 = arith.constant 0 : index
      %20 = vector.load %arg6[%c0_18, %c0_19] : memref<1x32xf32, #tpu.memory_space<vmem>>, vector<1x32xf32>
      %21 = vector.broadcast %20 : vector<1x32xf32> to vector<4x32xf32>
      %22 = arith.addf %19, %21 : vector<4x32xf32>
      %23 = arith.negf %22 : vector<4x32xf32>
      %24 = math.exp %23 : vector<4x32xf32>
      %cst_20 = arith.constant 1.000000e+00 : f32
      %25 = vector.broadcast %cst_20 : f32 to vector<4x32xf32>
      %26 = arith.addf %25, %24 : vector<4x32xf32>
      %27 = arith.divf %25, %26 : vector<4x32xf32>
      %28 = vector.shape_cast %27 : vector<4x32xf32> to vector<4x32x1xf32>
      %c0_21 = arith.constant 0 : index
      %c0_22 = arith.constant 0 : index
      %c0_23 = arith.constant 0 : index
      %29 = vector.load %arg8[%c0_21, %c0_22, %c0_23] : memref<4x32x1xf32, #tpu.memory_space<vmem>>, vector<4x32x1xf32>
      tpu.vector_store %arg8[%c0_21, %c0_22, %c0_23], %28 {strides = array<i32>} : memref<4x32x1xf32, #tpu.memory_space<vmem>>, vector<4x32x1xf32>,
    } else {
    }
    %c0 = arith.constant 0 : index
    %c0_2 = arith.constant 0 : index
    %c0_3 = arith.constant 0 : index
    %5 = vector.load %arg8[%c0, %c0_2, %c0_3] : memref<4x32x1xf32, #tpu.memory_space<vmem>>, vector<4x32x1xf32>
    %6 = vector.shape_cast %5 : vector<4x32x1xf32> to vector<4x1x32x1xf32>
    %c0_4 = arith.constant 0 : index
    %c0_5 = arith.constant 0 : index
    %c0_6 = arith.constant 0 : index
    %7 = vector.load %arg3[%c0_4, %c0_5, %c0_6] : memref<2x32x256xf32, #tpu.memory_space<vmem>>, vector<2x32x256xf32>
    %8 = vector.shape_cast %7 : vector<2x32x256xf32> to vector<1x2x32x256xf32>
    %9 = vector.broadcast %6 : vector<4x1x32x1xf32> to vector<4x2x32x256xf32>
    %10 = vector.broadcast %8 : vector<1x2x32x256xf32> to vector<4x2x32x256xf32>
    %11 = arith.mulf %9, %10 : vector<4x2x32x256xf32>
    %12 = arith.truncf %11 : vector<4x2x32x256xf32> to vector<4x2x32x256xbf16>
    %c0_7 = arith.constant 0 : index
    %c0_8 = arith.constant 0 : index
    %c0_9 = arith.constant 0 : index
    %c0_10 = arith.constant 0 : index
    %13 = vector.load %arg7[%c0_7, %c0_8, %c0_9, %c0_10] : memref<4x2x32x256xbf16, #tpu.memory_space<vmem>>, vector<4x2x32x256xbf16>
    tpu.vector_store %arg7[%c0_7, %c0_8, %c0_9, %c0_10], %12 {strides = array<i32>} : memref<4x2x32x256xbf16, #tpu.memory_space<vmem>>, vector<4x2x32x256xbf16>,
    return
  }
  func.func @transform_0(%arg0: i32, %arg1: i32, %arg2: i32) -> (i32, i32, i32) {
    %c0_i32 = arith.constant 0 : i32
    %c0_i32_0 = arith.constant 0 : i32
    return %arg1, %c0_i32, %arg2 : i32, i32, i32
  }
  func.func @transform_1(%arg0: i32, %arg1: i32, %arg2: i32) -> (i32, i32, i32) {
    %c0_i32 = arith.constant 0 : i32
    %c0_i32_0 = arith.constant 0 : i32
    %c0_i32_1 = arith.constant 0 : i32
    return %arg0, %c0_i32, %c0_i32_0 : i32, i32, i32
  }
  func.func @transform_2(%arg0: i32, %arg1: i32, %arg2: i32) -> (i32, i32) {
    %c0_i32 = arith.constant 0 : i32
    %c0_i32_0 = arith.constant 0 : i32
    %c0_i32_1 = arith.constant 0 : i32
    return %c0_i32, %c0_i32_0 : i32, i32
  }
  func.func @transform_3(%arg0: i32, %arg1: i32, %arg2: i32) -> (i32, i32) {
    %c0_i32 = arith.constant 0 : i32
    %c0_i32_0 = arith.constant 0 : i32
    %c0_i32_1 = arith.constant 0 : i32
    return %c0_i32, %c0_i32_0 : i32, i32
  }
  func.func @transform_4(%arg0: i32, %arg1: i32, %arg2: i32) -> (i32, i32, i32, i32) {
    %c0_i32 = arith.constant 0 : i32
    %c0_i32_0 = arith.constant 0 : i32
    return %arg0, %arg1, %c0_i32, %arg2 : i32, i32, i32, i32
  }
}

module attributes {stable_mosaic.version = 11 : i64} {
  func.func @_aaf_fused_kernel(%arg0: i32, %arg1: i32, %arg2: i32, %arg3: memref<2x32x128xf32, #tpu.memory_space<vmem>>, %arg4: memref<4x16x32xf32, #tpu.memory_space<vmem>>, %arg5: memref<32x32xf32, #tpu.memory_space<vmem>>, %arg6: memref<1x32xf32, #tpu.memory_space<vmem>>, %arg7: memref<4x2x32x128xbf16, #tpu.memory_space<vmem>>, %arg8: memref<4x32x1xf32, #tpu.memory_space<vmem>>) attributes {dimension_semantics = [#tpu.dimension_semantics<parallel>, #tpu.dimension_semantics<arbitrary>, #tpu.dimension_semantics<arbitrary>], iteration_bounds = array<i64: 1, 1, 1>, scalar_prefetch = 0 : i64, scratch_operands = 1 : i64, tpu.core_type = #tpu.core_type<tc>, window_params = [{transform_indices = @transform_0, window_bounds = array<i64: 2, 32, 128>}, {transform_indices = @transform_1, window_bounds = array<i64: 4, 16, 32>}, {pipeline_mode = #tpu.pipeline_mode<synchronous>, transform_indices = @transform_2, window_bounds = array<i64: 32, 32>}, {pipeline_mode = #tpu.pipeline_mode<synchronous>, transform_indices = @transform_3, window_bounds = array<i64: 1, 32>}, {transform_indices = @transform_4, window_bounds = array<i64: 4, 2, 32, 128>}]} {
    %c0_i32 = arith.constant 0 : i32
    %0 = arith.cmpi eq, %arg1, %c0_i32 : i32
    %c0_i32_0 = arith.constant 0 : i32
    %1 = arith.cmpi eq, %arg2, %c0_i32_0 : i32
    %2 = arith.andi %0, %1 : i1
    %3 = arith.extui %2 : i1 to i32
    %c0_i32_1 = arith.constant 0 : i32
    %4 = arith.cmpi ne, %3, %c0_i32_1 : i32
    scf.if %4 {
      %c0_11 = arith.constant 0 : index
      %c0_12 = arith.constant 0 : index
      %c0_13 = arith.constant 0 : index
      %14 = vector.load %arg4[%c0_11, %c0_12, %c0_13] : memref<4x16x32xf32, #tpu.memory_space<vmem>>, vector<4x16x32xf32>
      %cst = arith.constant dense<0.000000e+00> : vector<4x32xf32>
      %15 = vector.multi_reduction <add>, %14, %cst [1] : vector<4x16x32xf32> to vector<4x32xf32>
      %cst_14 = arith.constant 1.600000e+01 : f32
      %16 = vector.broadcast %cst_14 : f32 to vector<4x32xf32>
      %17 = arith.divf %15, %16 : vector<4x32xf32>
      %c0_15 = arith.constant 0 : index
      %c0_16 = arith.constant 0 : index
      %18 = vector.load %arg5[%c0_15, %c0_16] : memref<32x32xf32, #tpu.memory_space<vmem>>, vector<32x32xf32>
      %cst_17 = arith.constant dense<0.000000e+00> : vector<4x32xf32>
      %19 = tpu.matmul %17, %18, %cst_17 {dimension_numbers = #tpu.dot_dimension_numbers<[1], [0], [0], [1], [0, 0, 1, 1], [], []>} : vector<4x32xf32>, vector<32x32xf32>, vector<4x32xf32> -> vector<4x32xf32>
      %c0_18 = arith.constant 0 : index
      %c0_19 = arith.constant 0 : index
      %20 = vector.load %arg6[%c0_18, %c0_19] : memref<1x32xf32, #tpu.memory_space<vmem>>, vector<1x32xf32>
      %21 = vector.broadcast %20 : vector<1x32xf32> to vector<4x32xf32>
      %22 = arith.addf %19, %21 : vector<4x32xf32>
      %23 = arith.negf %22 : vector<4x32xf32>
      %24 = math.exp %23 : vector<4x32xf32>
      %cst_20 = arith.constant 1.000000e+00 : f32
      %25 = vector.broadcast %cst_20 : f32 to vector<4x32xf32>
      %26 = arith.addf %25, %24 : vector<4x32xf32>
      %27 = arith.divf %25, %26 : vector<4x32xf32>
      %28 = vector.shape_cast %27 : vector<4x32xf32> to vector<4x32x1xf32>
      %c0_21 = arith.constant 0 : index
      %c0_22 = arith.constant 0 : index
      %c0_23 = arith.constant 0 : index
      %29 = vector.load %arg8[%c0_21, %c0_22, %c0_23] : memref<4x32x1xf32, #tpu.memory_space<vmem>>, vector<4x32x1xf32>
      tpu.vector_store %arg8[%c0_21, %c0_22, %c0_23], %28 {strides = array<i32>} : memref<4x32x1xf32, #tpu.memory_space<vmem>>, vector<4x32x1xf32>,
    } else {
    }
    %c0 = arith.constant 0 : index
    %c0_2 = arith.constant 0 : index
    %c0_3 = arith.constant 0 : index
    %5 = vector.load %arg8[%c0, %c0_2, %c0_3] : memref<4x32x1xf32, #tpu.memory_space<vmem>>, vector<4x32x1xf32>
    %6 = vector.shape_cast %5 : vector<4x32x1xf32> to vector<4x1x32x1xf32>
    %c0_4 = arith.constant 0 : index
    %c0_5 = arith.constant 0 : index
    %c0_6 = arith.constant 0 : index
    %7 = vector.load %arg3[%c0_4, %c0_5, %c0_6] : memref<2x32x128xf32, #tpu.memory_space<vmem>>, vector<2x32x128xf32>
    %8 = vector.shape_cast %7 : vector<2x32x128xf32> to vector<1x2x32x128xf32>
    %9 = vector.broadcast %6 : vector<4x1x32x1xf32> to vector<4x2x32x128xf32>
    %10 = vector.broadcast %8 : vector<1x2x32x128xf32> to vector<4x2x32x128xf32>
    %11 = arith.mulf %9, %10 : vector<4x2x32x128xf32>
    %12 = arith.truncf %11 : vector<4x2x32x128xf32> to vector<4x2x32x128xbf16>
    %c0_7 = arith.constant 0 : index
    %c0_8 = arith.constant 0 : index
    %c0_9 = arith.constant 0 : index
    %c0_10 = arith.constant 0 : index
    %13 = vector.load %arg7[%c0_7, %c0_8, %c0_9, %c0_10] : memref<4x2x32x128xbf16, #tpu.memory_space<vmem>>, vector<4x2x32x128xbf16>
    tpu.vector_store %arg7[%c0_7, %c0_8, %c0_9, %c0_10], %12 {strides = array<i32>} : memref<4x2x32x128xbf16, #tpu.memory_space<vmem>>, vector<4x2x32x128xbf16>,
    return
  }
  func.func @transform_0(%arg0: i32, %arg1: i32, %arg2: i32) -> (i32, i32, i32) {
    %c0_i32 = arith.constant 0 : i32
    %c0_i32_0 = arith.constant 0 : i32
    return %arg1, %c0_i32, %arg2 : i32, i32, i32
  }
  func.func @transform_1(%arg0: i32, %arg1: i32, %arg2: i32) -> (i32, i32, i32) {
    %c0_i32 = arith.constant 0 : i32
    %c0_i32_0 = arith.constant 0 : i32
    %c0_i32_1 = arith.constant 0 : i32
    return %arg0, %c0_i32, %c0_i32_0 : i32, i32, i32
  }
  func.func @transform_2(%arg0: i32, %arg1: i32, %arg2: i32) -> (i32, i32) {
    %c0_i32 = arith.constant 0 : i32
    %c0_i32_0 = arith.constant 0 : i32
    %c0_i32_1 = arith.constant 0 : i32
    return %c0_i32, %c0_i32_0 : i32, i32
  }
  func.func @transform_3(%arg0: i32, %arg1: i32, %arg2: i32) -> (i32, i32) {
    %c0_i32 = arith.constant 0 : i32
    %c0_i32_0 = arith.constant 0 : i32
    %c0_i32_1 = arith.constant 0 : i32
    return %c0_i32, %c0_i32_0 : i32, i32
  }
  func.func @transform_4(%arg0: i32, %arg1: i32, %arg2: i32) -> (i32, i32, i32, i32) {
    %c0_i32 = arith.constant 0 : i32
    %c0_i32_0 = arith.constant 0 : i32
    return %arg0, %arg1, %c0_i32, %arg2 : i32, i32, i32, i32
  }
}

</mosaic_0001>

<llo_original>
// kernel: _aaf_levels.3
$region0: #{_aaf_levels.3}
  #allocation0 [shape = 'u32[]', space=smem, size = 0x4, offset = 0x4, fixed_abs, tag = 'smem constant byte address 0x4 - core index']
  #allocation1 [shape = 'u32[72,128]{1,0:T(1,128)}', space=vmem, size = 0x9000, scoped, tag = 'internal scratch']
  #allocation2 [shape = 'f32[4,32,1]{2,1,0:T(8,128)}', space=vmem, size = 0x10000, scoped, tag = 'scratch operand']
  %s0 = inlined_call_operand.vmem [shape: f32[2,32,128], index: 0, kind: input, shape index: {}]
  %s1 = inlined_call_operand.vmem [shape: f32[4,16,32], index: 1, kind: input, shape index: {}]
  %s2 = inlined_call_operand.vmem [shape: f32[32,32], index: 2, kind: input, shape index: {}]
  %s3 = inlined_call_operand.vmem [shape: f32[1,32], index: 3, kind: input, shape index: {}]
  %s4 = inlined_call_operand.vmem [shape: bf16[4,2,32,128], index: 4, kind: output, shape index: {}]
  %s5 = sld [smem:[#allocation0]]
  $region30: #{_aaf_levels.3} parent=0
    _
  %s7 = ssub.s32 1, %s5
  %s8 = scalar_select 0, %s7, %s5
  // Predicated region
  $region2: #{_aaf_levels.3} parent=0 // pred_check
    _
  $region3: #{_aaf_levels.3} parent=0 // pred_check_branch
    %10 = sbr.rel (0) target = $region5
  $region4: #{_aaf_levels.3} parent=0 // pred_region
    _
  $region5: #{_aaf_levels.3} parent=0 // pred_fallthru
    _
  // Predicated region
  $region6: #{_aaf_levels.3} parent=0 // pred_check
    _
  $region7: #{_aaf_levels.3} parent=0 // pred_check_branch
    %12 = sbr.rel (0) target = $region9
  $region8: #{_aaf_levels.3} parent=0 // pred_region
    _
  $region9: #{_aaf_levels.3} parent=0 // pred_fallthru
    _
  // Predicated region
  $region10: #{_aaf_levels.3} parent=0 // pred_check
    _
  $region11: #{_aaf_levels.3} parent=0 // pred_check_branch
    %14 = sbr.rel (0) target = $region13
  $region12: #{_aaf_levels.3} parent=0 // pred_region
    _
  $region13: #{_aaf_levels.3} parent=0 // pred_fallthru
    _
  // Predicated region
  $region14: #{_aaf_levels.3} parent=0 // pred_check
    _
  $region15: #{_aaf_levels.3} parent=0 // pred_check_branch
    %16 = sbr.rel (0) target = $region17
  $region16: #{_aaf_levels.3} parent=0 // pred_region
    _
  $region17: #{_aaf_levels.3} parent=0 // pred_fallthru
    _
  %p17 = scmp.eq.s32.totalorder 0, 0
  %p18 = scmp.eq.s32.totalorder 0, 0
  %p19 = pnand %p17, %p18
  %p20 = pneg %p19
  // Predicated region
  $region18: #{_aaf_levels.3} parent=0 // pred_check
    _
  $region19: #{_aaf_levels.3} parent=0 // pred_check_branch
    %22 = sbr.rel (%p19) target = $region21
  $region20: #{_aaf_levels.3} parent=0 // pred_region
    %v23 = vld [vmem:[%s1] sm:$0xff]
    %v24 = vld [vmem:[%s1 + $0x8] sm:$0xff]
    %v25 = vld [vmem:[%s1 + $0x10] sm:$0xff]
    %v26 = vld [vmem:[%s1 + $0x18] sm:$0xff]
    %v27 = vld [vmem:[%s1 + $0x20] sm:$0xff]
    %v28 = vld [vmem:[%s1 + $0x28] sm:$0xff]
    %v29 = vld [vmem:[%s1 + $0x30] sm:$0xff]
    %v30 = vld [vmem:[%s1 + $0x38] sm:$0xff]
    %vm31 = vcmask 261120
    %v32 = vsel %vm31, %v23, 0.0
    %v33 = vsel %vm31, %v24, 0.0
    %v34 = vadd.f32 %v32, %v33
    %v35 = vrot.slane %v34, 4
    %v36 = vadd.f32 %v34, %v35
    %v37 = vrot.slane %v36, 2
    %v38 = vadd.f32 %v36, %v37
    %v39 = vrot.slane %v38, 1
    %v40 = vadd.f32 %v38, %v39
    %v41 = vsel %vm31, %v25, 0.0
    %v42 = vsel %vm31, %v26, 0.0
    %v43 = vadd.f32 %v41, %v42
    %v44 = vrot.slane %v43, 4
    %v45 = vadd.f32 %v43, %v44
    %v46 = vrot.slane %v45, 2
    %v47 = vadd.f32 %v45, %v46
    %v48 = vrot.slane %v47, 1
    %v49 = vadd.f32 %v47, %v48
    %v50 = vsel %vm31, %v27, 0.0
    %v51 = vsel %vm31, %v28, 0.0
    %v52 = vadd.f32 %v50, %v51
    %v53 = vrot.slane %v52, 4
    %v54 = vadd.f32 %v52, %v53
    %v55 = vrot.slane %v54, 2
    %v56 = vadd.f32 %v54, %v55
    %v57 = vrot.slane %v56, 1
    %v58 = vadd.f32 %v56, %v57
    %v59 = vsel %vm31, %v29, 0.0
    %v60 = vsel %vm31, %v30, 0.0
    %v61 = vadd.f32 %v59, %v60
    %v62 = vrot.slane %v61, 4
    %v63 = vadd.f32 %v61, %v62
    %v64 = vrot.slane %v63, 2
    %v65 = vadd.f32 %v63, %v64
    %v66 = vrot.slane %v65, 1
    %v67 = vadd.f32 %v65, %v66
    %v68 = vrcp.pop 16.0
    %v69 = vmul.f32 16.0, %v68
    %v70 = vsub.f32 1.0, %v69
    %v71 = vmul.f32 %v68, %v70
    %v72 = vadd.f32 %v68, %v71
    %vm73 = vweird.f32 %v68
    %v74 = vsel %vm73, %v68, %v72
    %v75 = vmul.f32 %v40, %v74
    %v76 = vmul.f32 %v49, %v74
    %v77 = vmul.f32 %v58, %v74
    %v78 = vmul.f32 %v67, %v74
    %v79 = vld [vmem:[%s2] sm:$0xff]
    %v80 = vld [vmem:[%s2 + $0x8] sm:$0xff]
    %v81 = vld [vmem:[%s2 + $0x10] sm:$0xff]
    %v82 = vld [vmem:[%s2 + $0x18] sm:$0xff]
    %v83 = vld [vmem:[%s3] sm:$0x1]
    %v85 = vperm.slane %v83, 0
    %vm91 = vcmask 1041409
    %v92 = vsel %vm91, %v76, %v75
    %vm93 = vcmask 1042434
    %v94 = vsel %vm93, %v77, %v92
    %vm95 = vcmask 1043459
    %v96 = vsel %vm95, %v78, %v94
    %v97 = vsel %vm31, %v96, 0
    %99 = vmatpush.msra.mxu0 0.0
    %100 = vmatpush.msra.mxu0 0.0
    %101 = vmatpush.msra.mxu0 0.0
    %102 = vmatpush.msra.mxu0 0.0
    %103 = vmatpush.msra.mxu0 0.0
    %104 = vmatpush.msra.mxu0 0.0
    %105 = vmatpush.msra.mxu0 0.0
    %106 = vmatpush.msra.mxu0 0.0
    %107 = vmatpush.msra.mxu0 0.0
    %108 = vmatpush.msra.mxu0 0.0
    %109 = vmatpush.msra.mxu0 0.0
    %110 = vmatpush.msra.mxu0 0.0
    %111 = vmatpush.msra.mxu0 %v82
    %112 = vmatpush.msra.mxu0 %v81
    %113 = vmatpush.msra.mxu0 %v80
    %114 = vmatpush.msra.mxu0 %v79
    %115 = vmatmul.f32.gmra.mxu0 %v97
    %v116 = vpop.f32.mrf.mxu0
    %v117 = vadd.f32 %v85, %v116
    %118 = vdwg.mxu0
    %v119 = vxor.u32 %v117, 2147483648
    %v120 = vmul.f32 %v119, 1.442695
    %v121 = vpow.pop %v120
    %v122 = vadd.f32 %v121, 1.0
    %v123 = vrcp.pop %v122
    %v124 = vmul.f32 %v122, %v123
    %v125 = vsub.f32 1.0, %v124
    %v126 = vmul.f32 %v123, %v125
    %v127 = vadd.f32 %v123, %v126
    %vm128 = vweird.f32 %v122
    %vm129 = vweird.f32 %v123
    %vm130 = vmor %vm128, %vm129
    %v131 = vsel %vm130, %v123, %v127
    %v132 = vand.u32 2147483647, %v122
    %vm133 = vcmp.eq.f32.partialorder %v132, 8.507059e+37
    %v134 = vand.u32 %v122, 2147483648
    %v135 = vor.u32 1.1754944e-38, %v134
    %v136 = vsel %vm133, %v135, %v131
    %v137 = vmul.f32 1.0, %v136
    %v138 = vperm.slane %v137, 0
    %v139 = vlaneseq
    %v140 = vshrl.u32 %v139, 7
    %142 = vset.pattern.permute.xlu0 %v140
    %143 = vperm.xlu0 %142, %v138
    %v144 = vpop.permute.xlu0 %143
    %v145 = vlaneseq
    %v146 = vshrl.u32 %v145, 7
    %v147 = vadd.s32 %v146, 8
    %148 = vset.pattern.permute.xlu0 %v147
    %149 = vperm.xlu0 %148, %v138
    %v150 = vpop.permute.xlu0 %149
    %v151 = vlaneseq
    %v152 = vshrl.u32 %v151, 7
    %v153 = vadd.s32 %v152, 16
    %154 = vset.pattern.permute.xlu0 %v153
    %155 = vperm.xlu0 %154, %v138
    %v156 = vpop.permute.xlu0 %155
    %v157 = vlaneseq
    %v158 = vshrl.u32 %v157, 7
    %v159 = vadd.s32 %v158, 24
    %160 = vset.pattern.permute.xlu0 %v159
    %161 = vperm.xlu0 %160, %v138
    %v162 = vpop.permute.xlu0 %161
    %v163 = vperm.slane %v137, 1
    %v164 = vlaneseq
    %v165 = vshrl.u32 %v164, 7
    %167 = vset.pattern.permute.xlu0 %v165
    %168 = vperm.xlu0 %167, %v163
    %v169 = vpop.permute.xlu0 %168
    %v170 = vlaneseq
    %v171 = vshrl.u32 %v170, 7
    %v172 = vadd.s32 %v171, 8
    %173 = vset.pattern.permute.xlu0 %v172
    %174 = vperm.xlu0 %173, %v163
    %v175 = vpop.permute.xlu0 %174
    %v176 = vlaneseq
    %v177 = vshrl.u32 %v176, 7
    %v178 = vadd.s32 %v177, 16
    %179 = vset.pattern.permute.xlu0 %v178
    %180 = vperm.xlu0 %179, %v163
    %v181 = vpop.permute.xlu0 %180
    %v182 = vlaneseq
    %v183 = vshrl.u32 %v182, 7
    %v184 = vadd.s32 %v183, 24
    %185 = vset.pattern.permute.xlu0 %v184
    %186 = vperm.xlu0 %185, %v163
    %v187 = vpop.permute.xlu0 %186
    %v188 = vperm.slane %v137, 2
    %v189 = vlaneseq
    %v190 = vshrl.u32 %v189, 7
    %192 = vset.pattern.permute.xlu0 %v190
    %193 = vperm.xlu0 %192, %v188
    %v194 = vpop.permute.xlu0 %193
    %v195 = vlaneseq
    %v196 = vshrl.u32 %v195, 7
    %v197 = vadd.s32 %v196, 8
    %198 = vset.pattern.permute.xlu0 %v197
    %199 = vperm.xlu0 %198, %v188
    %v200 = vpop.permute.xlu0 %199
    %v201 = vlaneseq
    %v202 = vshrl.u32 %v201, 7
    %v203 = vadd.s32 %v202, 16
    %204 = vset.pattern.permute.xlu0 %v203
    %205 = vperm.xlu0 %204, %v188
    %v206 = vpop.permute.xlu0 %205
    %v207 = vlaneseq
    %v208 = vshrl.u32 %v207, 7
    %v209 = vadd.s32 %v208, 24
    %210 = vset.pattern.permute.xlu0 %v209
    %211 = vperm.xlu0 %210, %v188
    %v212 = vpop.permute.xlu0 %211
    %v213 = vperm.slane %v137, 3
    %v214 = vlaneseq
    %v215 = vshrl.u32 %v214, 7
    %217 = vset.pattern.permute.xlu0 %v215
    %218 = vperm.xlu0 %217, %v213
    %v219 = vpop.permute.xlu0 %218
    %v220 = vlaneseq
    %v221 = vshrl.u32 %v220, 7
    %v222 = vadd.s32 %v221, 8
    %223 = vset.pattern.permute.xlu0 %v222
    %224 = vperm.xlu0 %223, %v213
    %v225 = vpop.permute.xlu0 %224
    %v226 = vlaneseq
    %v227 = vshrl.u32 %v226, 7
    %v228 = vadd.s32 %v227, 16
    %229 = vset.pattern.permute.xlu0 %v228
    %230 = vperm.xlu0 %229, %v213
    %v231 = vpop.permute.xlu0 %230
    %v232 = vlaneseq
    %v233 = vshrl.u32 %v232, 7
    %v234 = vadd.s32 %v233, 24
    %235 = vset.pattern.permute.xlu0 %v234
    %236 = vperm.xlu0 %235, %v213
    %v237 = vpop.permute.xlu0 %236
    %vm238 = vcmask 7168
    %239 = vst.msk [vmem:[#allocation2] sm:$0xff] %vm238, %v144
    %240 = vst.msk [vmem:[#allocation2 + $0x8] sm:$0xff] %vm238, %v150
    %241 = vst.msk [vmem:[#allocation2 + $0x10] sm:$0xff] %vm238, %v156
    %242 = vst.msk [vmem:[#allocation2 + $0x18] sm:$0xff] %vm238, %v162
    %243 = vst.msk [vmem:[#allocation2 + $0x20] sm:$0xff] %vm238, %v169
    %244 = vst.msk [vmem:[#allocation2 + $0x28] sm:$0xff] %vm238, %v175
    %245 = vst.msk [vmem:[#allocation2 + $0x30] sm:$0xff] %vm238, %v181
    %246 = vst.msk [vmem:[#allocation2 + $0x38] sm:$0xff] %vm238, %v187
    %247 = vst.msk [vmem:[#allocation2 + $0x40] sm:$0xff] %vm238, %v194
    %248 = vst.msk [vmem:[#allocation2 + $0x48] sm:$0xff] %vm238, %v200
    %249 = vst.msk [vmem:[#allocation2 + $0x50] sm:$0xff] %vm238, %v206
    %250 = vst.msk [vmem:[#allocation2 + $0x58] sm:$0xff] %vm238, %v212
    %251 = vst.msk [vmem:[#allocation2 + $0x60] sm:$0xff] %vm238, %v219
    %252 = vst.msk [vmem:[#allocation2 + $0x68] sm:$0xff] %vm238, %v225
    %253 = vst.msk [vmem:[#allocation2 + $0x70] sm:$0xff] %vm238, %v231
    %254 = vst.msk [vmem:[#allocation2 + $0x78] sm:$0xff] %vm238, %v237
  $region21: #{_aaf_levels.3} parent=0 // pred_fallthru
    _
  %v255 = vld [vmem:[#allocation2] sm:$0xff]
  %v256 = vld [vmem:[#allocation2 + $0x8] sm:$0xff]
  %v257 = vld [vmem:[#allocation2 + $0x10] sm:$0xff]
  %v258 = vld [vmem:[#allocation2 + $0x18] sm:$0xff]
  %v259 = vld [vmem:[#allocation2 + $0x20] sm:$0xff]
  %v260 = vld [vmem:[#allocation2 + $0x28] sm:$0xff]
  %v261 = vld [vmem:[#allocation2 + $0x30] sm:$0xff]
  %v262 = vld [vmem:[#allocation2 + $0x38] sm:$0xff]
  %v263 = vld [vmem:[#allocation2 + $0x40] sm:$0xff]
  %v264 = vld [vmem:[#allocation2 + $0x48] sm:$0xff]
  %v265 = vld [vmem:[#allocation2 + $0x50] sm:$0xff]
  %v266 = vld [vmem:[#allocation2 + $0x58] sm:$0xff]
  %v267 = vld [vmem:[#allocation2 + $0x60] sm:$0xff]
  %v268 = vld [vmem:[#allocation2 + $0x68] sm:$0xff]
  %v269 = vld [vmem:[#allocation2 + $0x70] sm:$0xff]
  %v270 = vld [vmem:[#allocation2 + $0x78] sm:$0xff]
  %v271 = vld [vmem:[%s0] sm:$0xff]
  %v272 = vld [vmem:[%s0 + $0x8] sm:$0xff]
  %v273 = vld [vmem:[%s0 + $0x10] sm:$0xff]
  %v274 = vld [vmem:[%s0 + $0x18] sm:$0xff]
  %v275 = vld [vmem:[%s0 + $0x20] sm:$0xff]
  %v276 = vld [vmem:[%s0 + $0x28] sm:$0xff]
  %v277 = vld [vmem:[%s0 + $0x30] sm:$0xff]
  %v278 = vld [vmem:[%s0 + $0x38] sm:$0xff]
  %280 = vset.pattern.permute.xlu0 0
  %281 = vperm.xlu0 %280, %v255
  %v282 = vpop.permute.xlu0 %281
  %285 = vset.pattern.permute.xlu0 0
  %286 = vperm.xlu0 %285, %v256
  %v287 = vpop.permute.xlu0 %286
  %290 = vset.pattern.permute.xlu0 0
  %291 = vperm.xlu0 %290, %v257
  %v292 = vpop.permute.xlu0 %291
  %295 = vset.pattern.permute.xlu0 0
  %296 = vperm.xlu0 %295, %v258
  %v297 = vpop.permute.xlu0 %296
  %300 = vset.pattern.permute.xlu0 0
  %301 = vperm.xlu0 %300, %v259
  %v302 = vpop.permute.xlu0 %301
  %305 = vset.pattern.permute.xlu0 0
  %306 = vperm.xlu0 %305, %v260
  %v307 = vpop.permute.xlu0 %306
  %310 = vset.pattern.permute.xlu0 0
  %311 = vperm.xlu0 %310, %v261
  %v312 = vpop.permute.xlu0 %311
  %315 = vset.pattern.permute.xlu0 0
  %316 = vperm.xlu0 %315, %v262
  %v317 = vpop.permute.xlu0 %316
  %320 = vset.pattern.permute.xlu0 0
  %321 = vperm.xlu0 %320, %v263
  %v322 = vpop.permute.xlu0 %321
  %325 = vset.pattern.permute.xlu0 0
  %326 = vperm.xlu0 %325, %v264
  %v327 = vpop.permute.xlu0 %326
  %330 = vset.pattern.permute.xlu0 0
  %331 = vperm.xlu0 %330, %v265
  %v332 = vpop.permute.xlu0 %331
  %335 = vset.pattern.permute.xlu0 0
  %336 = vperm.xlu0 %335, %v266
  %v337 = vpop.permute.xlu0 %336
  %340 = vset.pattern.permute.xlu0 0
  %341 = vperm.xlu0 %340, %v267
  %v342 = vpop.permute.xlu0 %341
  %345 = vset.pattern.permute.xlu0 0
  %346 = vperm.xlu0 %345, %v268
  %v347 = vpop.permute.xlu0 %346
  %350 = vset.pattern.permute.xlu0 0
  %351 = vperm.xlu0 %350, %v269
  %v352 = vpop.permute.xlu0 %351
  %355 = vset.pattern.permute.xlu0 0
  %356 = vperm.xlu0 %355, %v270
  %v357 = vpop.permute.xlu0 %356
  %v359 = vmul.f32 %v282, %v271
  %v360 = vmul.f32 %v287, %v272
  %v361 = vmul.f32 %v292, %v273
  %v362 = vmul.f32 %v297, %v274
  %v363 = vmul.f32 %v282, %v275
  %v364 = vmul.f32 %v287, %v276
  %v365 = vmul.f32 %v292, %v277
  %v366 = vmul.f32 %v297, %v278
  %v367 = vmul.f32 %v302, %v271
  %v368 = vmul.f32 %v307, %v272
  %v369 = vmul.f32 %v312, %v273
  %v370 = vmul.f32 %v317, %v274
  %v371 = vmul.f32 %v302, %v275
  %v372 = vmul.f32 %v307, %v276
  %v373 = vmul.f32 %v312, %v277
  %v374 = vmul.f32 %v317, %v278
  %v375 = vmul.f32 %v322, %v271
  %v376 = vmul.f32 %v327, %v272
  %v377 = vmul.f32 %v332, %v273
  %v378 = vmul.f32 %v337, %v274
  %v379 = vmul.f32 %v322, %v275
  %v380 = vmul.f32 %v327, %v276
  %v381 = vmul.f32 %v332, %v277
  %v382 = vmul.f32 %v337, %v278
  %v383 = vmul.f32 %v342, %v271
  %v384 = vmul.f32 %v347, %v272
  %v385 = vmul.f32 %v352, %v273
  %v386 = vmul.f32 %v357, %v274
  %v387 = vmul.f32 %v342, %v275
  %v388 = vmul.f32 %v347, %v276
  %v389 = vmul.f32 %v352, %v277
  %v390 = vmul.f32 %v357, %v278
  %v391 = vpack.c.bf16 %v359, %v359
  %v392 = vpack.c.bf16 %v360, %v360
  %v393 = vpack.c.bf16 %v361, %v361
  %v394 = vpack.c.bf16 %v362, %v362
  %v395 = vpack.c.bf16 %v363, %v363
  %v396 = vpack.c.bf16 %v364, %v364
  %v397 = vpack.c.bf16 %v365, %v365
  %v398 = vpack.c.bf16 %v366, %v366
  %v399 = vpack.c.bf16 %v367, %v367
  %v400 = vpack.c.bf16 %v368, %v368
  %v401 = vpack.c.bf16 %v369, %v369
  %v402 = vpack.c.bf16 %v370, %v370
  %v403 = vpack.c.bf16 %v371, %v371
  %v404 = vpack.c.bf16 %v372, %v372
  %v405 = vpack.c.bf16 %v373, %v373
  %v406 = vpack.c.bf16 %v374, %v374
  %v407 = vpack.c.bf16 %v375, %v375
  %v408 = vpack.c.bf16 %v376, %v376
  %v409 = vpack.c.bf16 %v377, %v377
  %v410 = vpack.c.bf16 %v378, %v378
  %v411 = vpack.c.bf16 %v379, %v379
  %v412 = vpack.c.bf16 %v380, %v380
  %v413 = vpack.c.bf16 %v381, %v381
  %v414 = vpack.c.bf16 %v382, %v382
  %v415 = vpack.c.bf16 %v383, %v383
  %v416 = vpack.c.bf16 %v384, %v384
  %v417 = vpack.c.bf16 %v385, %v385
  %v418 = vpack.c.bf16 %v386, %v386
  %v419 = vpack.c.bf16 %v387, %v387
  %v420 = vpack.c.bf16 %v388, %v388
  %v421 = vpack.c.bf16 %v389, %v389
  %v422 = vpack.c.bf16 %v390, %v390
  %423 = vst [vmem:[%s4] sm:$0xf] %v391
  %424 = vst [vmem:[%s4 + $0x4] sm:$0xf] %v392
  %425 = vst [vmem:[%s4 + $0x8] sm:$0xf] %v393
  %426 = vst [vmem:[%s4 + $0xc] sm:$0xf] %v394
  %427 = vst [vmem:[%s4 + $0x10] sm:$0xf] %v395
  %428 = vst [vmem:[%s4 + $0x14] sm:$0xf] %v396
  %429 = vst [vmem:[%s4 + $0x18] sm:$0xf] %v397
  %430 = vst [vmem:[%s4 + $0x1c] sm:$0xf] %v398
  %431 = vst [vmem:[%s4 + $0x20] sm:$0xf] %v399
  %432 = vst [vmem:[%s4 + $0x24] sm:$0xf] %v400
  %433 = vst [vmem:[%s4 + $0x28] sm:$0xf] %v401
  %434 = vst [vmem:[%s4 + $0x2c] sm:$0xf] %v402
  %435 = vst [vmem:[%s4 + $0x30] sm:$0xf] %v403
  %436 = vst [vmem:[%s4 + $0x34] sm:$0xf] %v404
  %437 = vst [vmem:[%s4 + $0x38] sm:$0xf] %v405
  %438 = vst [vmem:[%s4 + $0x3c] sm:$0xf] %v406
  %439 = vst [vmem:[%s4 + $0x40] sm:$0xf] %v407
  %440 = vst [vmem:[%s4 + $0x44] sm:$0xf] %v408
  %441 = vst [vmem:[%s4 + $0x48] sm:$0xf] %v409
  %442 = vst [vmem:[%s4 + $0x4c] sm:$0xf] %v410
  %443 = vst [vmem:[%s4 + $0x50] sm:$0xf] %v411
  %444 = vst [vmem:[%s4 + $0x54] sm:$0xf] %v412
  %445 = vst [vmem:[%s4 + $0x58] sm:$0xf] %v413
  %446 = vst [vmem:[%s4 + $0x5c] sm:$0xf] %v414
  %447 = vst [vmem:[%s4 + $0x60] sm:$0xf] %v415
  %448 = vst [vmem:[%s4 + $0x64] sm:$0xf] %v416
  %449 = vst [vmem:[%s4 + $0x68] sm:$0xf] %v417
  %450 = vst [vmem:[%s4 + $0x6c] sm:$0xf] %v418
  %451 = vst [vmem:[%s4 + $0x70] sm:$0xf] %v419
  %452 = vst [vmem:[%s4 + $0x74] sm:$0xf] %v420
  %453 = vst [vmem:[%s4 + $0x78] sm:$0xf] %v421
  %454 = vst [vmem:[%s4 + $0x7c] sm:$0xf] %v422
  // Predicated region
  $region22: #{_aaf_levels.3} parent=0 // pred_check
    _
  $region23: #{_aaf_levels.3} parent=0 // pred_check_branch
    %456 = sbr.rel (0) target = $region25
  $region24: #{_aaf_levels.3} parent=0 // pred_region
    _
  $region25: #{_aaf_levels.3} parent=0 // pred_fallthru
    _
  // Predicated region
  $region26: #{_aaf_levels.3} parent=0 // pred_check
    _
  $region27: #{_aaf_levels.3} parent=0 // pred_check_branch
    %458 = sbr.rel (0) target = $region29
  $region28: #{_aaf_levels.3} parent=0 // pred_region
    _
  $region29: #{_aaf_levels.3} parent=0 // pred_fallthru
    _

// kernel: _aaf_levels.2
$region0: #{_aaf_levels.2}
  #allocation0 [shape = 'u32[]', space=smem, size = 0x4, offset = 0x4, fixed_abs, tag = 'smem constant byte address 0x4 - core index']
  #allocation1 [shape = 'u32[72,128]{1,0:T(1,128)}', space=vmem, size = 0x9000, scoped, tag = 'internal scratch']
  #allocation2 [shape = 'f32[4,32,1]{2,1,0:T(8,128)}', space=vmem, size = 0x10000, scoped, tag = 'scratch operand']
  %s0 = inlined_call_operand.vmem [shape: f32[2,32,256], index: 0, kind: input, shape index: {}]
  %s1 = inlined_call_operand.vmem [shape: f32[4,64,32], index: 1, kind: input, shape index: {}]
  %s2 = inlined_call_operand.vmem [shape: f32[32,32], index: 2, kind: input, shape index: {}]
  %s3 = inlined_call_operand.vmem [shape: f32[1,32], index: 3, kind: input, shape index: {}]
  %s4 = inlined_call_operand.vmem [shape: bf16[4,2,32,256], index: 4, kind: output, shape index: {}]
  %s5 = sld [smem:[#allocation0]]
  $region30: #{_aaf_levels.2} parent=0
    _
  %s7 = ssub.s32 1, %s5
  %s8 = scalar_select 0, %s7, %s5
  // Predicated region
  $region2: #{_aaf_levels.2} parent=0 // pred_check
    _
  $region3: #{_aaf_levels.2} parent=0 // pred_check_branch
    %10 = sbr.rel (0) target = $region5
  $region4: #{_aaf_levels.2} parent=0 // pred_region
    _
  $region5: #{_aaf_levels.2} parent=0 // pred_fallthru
    _
  // Predicated region
  $region6: #{_aaf_levels.2} parent=0 // pred_check
    _
  $region7: #{_aaf_levels.2} parent=0 // pred_check_branch
    %12 = sbr.rel (0) target = $region9
  $region8: #{_aaf_levels.2} parent=0 // pred_region
    _
  $region9: #{_aaf_levels.2} parent=0 // pred_fallthru
    _
  // Predicated region
  $region10: #{_aaf_levels.2} parent=0 // pred_check
    _
  $region11: #{_aaf_levels.2} parent=0 // pred_check_branch
    %14 = sbr.rel (0) target = $region13
  $region12: #{_aaf_levels.2} parent=0 // pred_region
    _
  $region13: #{_aaf_levels.2} parent=0 // pred_fallthru
    _
  // Predicated region
  $region14: #{_aaf_levels.2} parent=0 // pred_check
    _
  $region15: #{_aaf_levels.2} parent=0 // pred_check_branch
    %16 = sbr.rel (0) target = $region17
  $region16: #{_aaf_levels.2} parent=0 // pred_region
    _
  $region17: #{_aaf_levels.2} parent=0 // pred_fallthru
    _
  %p17 = scmp.eq.s32.totalorder 0, 0
  %p18 = scmp.eq.s32.totalorder 0, 0
  %p19 = pnand %p17, %p18
  %p20 = pneg %p19
  // Predicated region
  $region18: #{_aaf_levels.2} parent=0 // pred_check
    _
  $region19: #{_aaf_levels.2} parent=0 // pred_check_branch
    %22 = sbr.rel (%p19) target = $region21
  $region20: #{_aaf_levels.2} parent=0 // pred_region
    %v23 = vld [vmem:[%s1] sm:$0xff]
    %v24 = vld [vmem:[%s1 + $0x8] sm:$0xff]
    %v25 = vld [vmem:[%s1 + $0x10] sm:$0xff]
    %v26 = vld [vmem:[%s1 + $0x18] sm:$0xff]
    %v27 = vld [vmem:[%s1 + $0x20] sm:$0xff]
    %v28 = vld [vmem:[%s1 + $0x28] sm:$0xff]
    %v29 = vld [vmem:[%s1 + $0x30] sm:$0xff]
    %v30 = vld [vmem:[%s1 + $0x38] sm:$0xff]
    %v31 = vld [vmem:[%s1 + $0x40] sm:$0xff]
    %v32 = vld [vmem:[%s1 + $0x48] sm:$0xff]
    %v33 = vld [vmem:[%s1 + $0x50] sm:$0xff]
    %v34 = vld [vmem:[%s1 + $0x58] sm:$0xff]
    %v35 = vld [vmem:[%s1 + $0x60] sm:$0xff]
    %v36 = vld [vmem:[%s1 + $0x68] sm:$0xff]
    %v37 = vld [vmem:[%s1 + $0x70] sm:$0xff]
    %v38 = vld [vmem:[%s1 + $0x78] sm:$0xff]
    %v39 = vld [vmem:[%s1 + $0x80] sm:$0xff]
    %v40 = vld [vmem:[%s1 + $0x88] sm:$0xff]
    %v41 = vld [vmem:[%s1 + $0x90] sm:$0xff]
    %v42 = vld [vmem:[%s1 + $0x98] sm:$0xff]
    %v43 = vld [vmem:[%s1 + $0xa0] sm:$0xff]
    %v44 = vld [vmem:[%s1 + $0xa8] sm:$0xff]
    %v45 = vld [vmem:[%s1 + $0xb0] sm:$0xff]
    %v46 = vld [vmem:[%s1 + $0xb8] sm:$0xff]
    %v47 = vld [vmem:[%s1 + $0xc0] sm:$0xff]
    %v48 = vld [vmem:[%s1 + $0xc8] sm:$0xff]
    %v49 = vld [vmem:[%s1 + $0xd0] sm:$0xff]
    %v50 = vld [vmem:[%s1 + $0xd8] sm:$0xff]
    %v51 = vld [vmem:[%s1 + $0xe0] sm:$0xff]
    %v52 = vld [vmem:[%s1 + $0xe8] sm:$0xff]
    %v53 = vld [vmem:[%s1 + $0xf0] sm:$0xff]
    %v54 = vld [vmem:[%s1 + $0xf8] sm:$0xff]
    %vm55 = vcmask 261120
    %v56 = vsel %vm55, %v23, 0.0
    %v57 = vsel %vm55, %v24, 0.0
    %v58 = vadd.f32 %v56, %v57
    %v59 = vsel %vm55, %v25, 0.0
    %v60 = vadd.f32 %v58, %v59
    %v61 = vsel %vm55, %v26, 0.0
    %v62 = vadd.f32 %v60, %v61
    %v63 = vsel %vm55, %v27, 0.0
    %v64 = vadd.f32 %v62, %v63
    %v65 = vsel %vm55, %v28, 0.0
    %v66 = vadd.f32 %v64, %v65
    %v67 = vsel %vm55, %v29, 0.0
    %v68 = vadd.f32 %v66, %v67
    %v69 = vsel %vm55, %v30, 0.0
    %v70 = vadd.f32 %v68, %v69
    %v71 = vrot.slane %v70, 4
    %v72 = vadd.f32 %v70, %v71
    %v73 = vrot.slane %v72, 2
    %v74 = vadd.f32 %v72, %v73
    %v75 = vrot.slane %v74, 1
    %v76 = vadd.f32 %v74, %v75
    %v77 = vsel %vm55, %v31, 0.0
    %v78 = vsel %vm55, %v32, 0.0
    %v79 = vadd.f32 %v77, %v78
    %v80 = vsel %vm55, %v33, 0.0
    %v81 = vadd.f32 %v79, %v80
    %v82 = vsel %vm55, %v34, 0.0
    %v83 = vadd.f32 %v81, %v82
    %v84 = vsel %vm55, %v35, 0.0
    %v85 = vadd.f32 %v83, %v84
    %v86 = vsel %vm55, %v36, 0.0
    %v87 = vadd.f32 %v85, %v86
    %v88 = vsel %vm55, %v37, 0.0
    %v89 = vadd.f32 %v87, %v88
    %v90 = vsel %vm55, %v38, 0.0
    %v91 = vadd.f32 %v89, %v90
    %v92 = vrot.slane %v91, 4
    %v93 = vadd.f32 %v91, %v92
    %v94 = vrot.slane %v93, 2
    %v95 = vadd.f32 %v93, %v94
    %v96 = vrot.slane %v95, 1
    %v97 = vadd.f32 %v95, %v96
    %v98 = vsel %vm55, %v39, 0.0
    %v99 = vsel %vm55, %v40, 0.0
    %v100 = vadd.f32 %v98, %v99
    %v101 = vsel %vm55, %v41, 0.0
    %v102 = vadd.f32 %v100, %v101
    %v103 = vsel %vm55, %v42, 0.0
    %v104 = vadd.f32 %v102, %v103
    %v105 = vsel %vm55, %v43, 0.0
    %v106 = vadd.f32 %v104, %v105
    %v107 = vsel %vm55, %v44, 0.0
    %v108 = vadd.f32 %v106, %v107
    %v109 = vsel %vm55, %v45, 0.0
    %v110 = vadd.f32 %v108, %v109
    %v111 = vsel %vm55, %v46, 0.0
    %v112 = vadd.f32 %v110, %v111
    %v113 = vrot.slane %v112, 4
    %v114 = vadd.f32 %v112, %v113
    %v115 = vrot.slane %v114, 2
    %v116 = vadd.f32 %v114, %v115
    %v117 = vrot.slane %v116, 1
    %v118 = vadd.f32 %v116, %v117
    %v119 = vsel %vm55, %v47, 0.0
    %v120 = vsel %vm55, %v48, 0.0
    %v121 = vadd.f32 %v119, %v120
    %v122 = vsel %vm55, %v49, 0.0
    %v123 = vadd.f32 %v121, %v122
    %v124 = vsel %vm55, %v50, 0.0
    %v125 = vadd.f32 %v123, %v124
    %v126 = vsel %vm55, %v51, 0.0
    %v127 = vadd.f32 %v125, %v126
    %v128 = vsel %vm55, %v52, 0.0
    %v129 = vadd.f32 %v127, %v128
    %v130 = vsel %vm55, %v53, 0.0
    %v131 = vadd.f32 %v129, %v130
    %v132 = vsel %vm55, %v54, 0.0
    %v133 = vadd.f32 %v131, %v132
    %v134 = vrot.slane %v133, 4
    %v135 = vadd.f32 %v133, %v134
    %v136 = vrot.slane %v135, 2
    %v137 = vadd.f32 %v135, %v136
    %v138 = vrot.slane %v137, 1
    %v139 = vadd.f32 %v137, %v138
    %v140 = vrcp.pop 64.0
    %v141 = vmul.f32 64.0, %v140
    %v142 = vsub.f32 1.0, %v141
    %v143 = vmul.f32 %v140, %v142
    %v144 = vadd.f32 %v140, %v143
    %vm145 = vweird.f32 %v140
    %v146 = vsel %vm145, %v140, %v144
    %v147 = vmul.f32 %v76, %v146
    %v148 = vmul.f32 %v97, %v146
    %v149 = vmul.f32 %v118, %v146
    %v150 = vmul.f32 %v139, %v146
    %v151 = vld [vmem:[%s2] sm:$0xff]
    %v152 = vld [vmem:[%s2 + $0x8] sm:$0xff]
    %v153 = vld [vmem:[%s2 + $0x10] sm:$0xff]
    %v154 = vld [vmem:[%s2 + $0x18] sm:$0xff]
    %v155 = vld [vmem:[%s3] sm:$0x1]
    %v157 = vperm.slane %v155, 0
    %vm163 = vcmask 1041409
    %v164 = vsel %vm163, %v148, %v147
    %vm165 = vcmask 1042434
    %v166 = vsel %vm165, %v149, %v164
    %vm167 = vcmask 1043459
    %v168 = vsel %vm167, %v150, %v166
    %v169 = vsel %vm55, %v168, 0
    %171 = vmatpush.msra.mxu0 0.0
    %172 = vmatpush.msra.mxu0 0.0
    %173 = vmatpush.msra.mxu0 0.0
    %174 = vmatpush.msra.mxu0 0.0
    %175 = vmatpush.msra.mxu0 0.0
    %176 = vmatpush.msra.mxu0 0.0
    %177 = vmatpush.msra.mxu0 0.0
    %178 = vmatpush.msra.mxu0 0.0
    %179 = vmatpush.msra.mxu0 0.0
    %180 = vmatpush.msra.mxu0 0.0
    %181 = vmatpush.msra.mxu0 0.0
    %182 = vmatpush.msra.mxu0 0.0
    %183 = vmatpush.msra.mxu0 %v154
    %184 = vmatpush.msra.mxu0 %v153
    %185 = vmatpush.msra.mxu0 %v152
    %186 = vmatpush.msra.mxu0 %v151
    %187 = vmatmul.f32.gmra.mxu0 %v169
    %v188 = vpop.f32.mrf.mxu0
    %v189 = vadd.f32 %v157, %v188
    %190 = vdwg.mxu0
    %v191 = vxor.u32 %v189, 2147483648
    %v192 = vmul.f32 %v191, 1.442695
    %v193 = vpow.pop %v192
    %v194 = vadd.f32 %v193, 1.0
    %v195 = vrcp.pop %v194
    %v196 = vmul.f32 %v194, %v195
    %v197 = vsub.f32 1.0, %v196
    %v198 = vmul.f32 %v195, %v197
    %v199 = vadd.f32 %v195, %v198
    %vm200 = vweird.f32 %v194
    %vm201 = vweird.f32 %v195
    %vm202 = vmor %vm200, %vm201
    %v203 = vsel %vm202, %v195, %v199
    %v204 = vand.u32 2147483647, %v194
    %vm205 = vcmp.eq.f32.partialorder %v204, 8.507059e+37
    %v206 = vand.u32 %v194, 2147483648
    %v207 = vor.u32 1.1754944e-38, %v206
    %v208 = vsel %vm205, %v207, %v203
    %v209 = vmul.f32 1.0, %v208
    %v210 = vperm.slane %v209, 0
    %v211 = vlaneseq
    %v212 = vshrl.u32 %v211, 7
    %214 = vset.pattern.permute.xlu0 %v212
    %215 = vperm.xlu0 %214, %v210
    %v216 = vpop.permute.xlu0 %215
    %v217 = vlaneseq
    %v218 = vshrl.u32 %v217, 7
    %v219 = vadd.s32 %v218, 8
    %220 = vset.pattern.permute.xlu0 %v219
    %221 = vperm.xlu0 %220, %v210
    %v222 = vpop.permute.xlu0 %221
    %v223 = vlaneseq
    %v224 = vshrl.u32 %v223, 7
    %v225 = vadd.s32 %v224, 16
    %226 = vset.pattern.permute.xlu0 %v225
    %227 = vperm.xlu0 %226, %v210
    %v228 = vpop.permute.xlu0 %227
    %v229 = vlaneseq
    %v230 = vshrl.u32 %v229, 7
    %v231 = vadd.s32 %v230, 24
    %232 = vset.pattern.permute.xlu0 %v231
    %233 = vperm.xlu0 %232, %v210
    %v234 = vpop.permute.xlu0 %233
    %v235 = vperm.slane %v209, 1
    %v236 = vlaneseq
    %v237 = vshrl.u32 %v236, 7
    %239 = vset.pattern.permute.xlu0 %v237
    %240 = vperm.xlu0 %239, %v235
    %v241 = vpop.permute.xlu0 %240
    %v242 = vlaneseq
    %v243 = vshrl.u32 %v242, 7
    %v244 = vadd.s32 %v243, 8
    %245 = vset.pattern.permute.xlu0 %v244
    %246 = vperm.xlu0 %245, %v235
    %v247 = vpop.permute.xlu0 %246
    %v248 = vlaneseq
    %v249 = vshrl.u32 %v248, 7
    %v250 = vadd.s32 %v249, 16
    %251 = vset.pattern.permute.xlu0 %v250
    %252 = vperm.xlu0 %251, %v235
    %v253 = vpop.permute.xlu0 %252
    %v254 = vlaneseq
    %v255 = vshrl.u32 %v254, 7
    %v256 = vadd.s32 %v255, 24
    %257 = vset.pattern.permute.xlu0 %v256
    %258 = vperm.xlu0 %257, %v235
    %v259 = vpop.permute.xlu0 %258
    %v260 = vperm.slane %v209, 2
    %v261 = vlaneseq
    %v262 = vshrl.u32 %v261, 7
    %264 = vset.pattern.permute.xlu0 %v262
    %265 = vperm.xlu0 %264, %v260
    %v266 = vpop.permute.xlu0 %265
    %v267 = vlaneseq
    %v268 = vshrl.u32 %v267, 7
    %v269 = vadd.s32 %v268, 8
    %270 = vset.pattern.permute.xlu0 %v269
    %271 = vperm.xlu0 %270, %v260
    %v272 = vpop.permute.xlu0 %271
    %v273 = vlaneseq
    %v274 = vshrl.u32 %v273, 7
    %v275 = vadd.s32 %v274, 16
    %276 = vset.pattern.permute.xlu0 %v275
    %277 = vperm.xlu0 %276, %v260
    %v278 = vpop.permute.xlu0 %277
    %v279 = vlaneseq
    %v280 = vshrl.u32 %v279, 7
    %v281 = vadd.s32 %v280, 24
    %282 = vset.pattern.permute.xlu0 %v281
    %283 = vperm.xlu0 %282, %v260
    %v284 = vpop.permute.xlu0 %283
    %v285 = vperm.slane %v209, 3
    %v286 = vlaneseq
    %v287 = vshrl.u32 %v286, 7
    %289 = vset.pattern.permute.xlu0 %v287
    %290 = vperm.xlu0 %289, %v285
    %v291 = vpop.permute.xlu0 %290
    %v292 = vlaneseq
    %v293 = vshrl.u32 %v292, 7
    %v294 = vadd.s32 %v293, 8
    %295 = vset.pattern.permute.xlu0 %v294
    %296 = vperm.xlu0 %295, %v285
    %v297 = vpop.permute.xlu0 %296
    %v298 = vlaneseq
    %v299 = vshrl.u32 %v298, 7
    %v300 = vadd.s32 %v299, 16
    %301 = vset.pattern.permute.xlu0 %v300
    %302 = vperm.xlu0 %301, %v285
    %v303 = vpop.permute.xlu0 %302
    %v304 = vlaneseq
    %v305 = vshrl.u32 %v304, 7
    %v306 = vadd.s32 %v305, 24
    %307 = vset.pattern.permute.xlu0 %v306
    %308 = vperm.xlu0 %307, %v285
    %v309 = vpop.permute.xlu0 %308
    %vm310 = vcmask 7168
    %311 = vst.msk [vmem:[#allocation2] sm:$0xff] %vm310, %v216
    %312 = vst.msk [vmem:[#allocation2 + $0x8] sm:$0xff] %vm310, %v222
    %313 = vst.msk [vmem:[#allocation2 + $0x10] sm:$0xff] %vm310, %v228
    %314 = vst.msk [vmem:[#allocation2 + $0x18] sm:$0xff] %vm310, %v234
    %315 = vst.msk [vmem:[#allocation2 + $0x20] sm:$0xff] %vm310, %v241
    %316 = vst.msk [vmem:[#allocation2 + $0x28] sm:$0xff] %vm310, %v247
    %317 = vst.msk [vmem:[#allocation2 + $0x30] sm:$0xff] %vm310, %v253
    %318 = vst.msk [vmem:[#allocation2 + $0x38] sm:$0xff] %vm310, %v259
    %319 = vst.msk [vmem:[#allocation2 + $0x40] sm:$0xff] %vm310, %v266
    %320 = vst.msk [vmem:[#allocation2 + $0x48] sm:$0xff] %vm310, %v272
    %321 = vst.msk [vmem:[#allocation2 + $0x50] sm:$0xff] %vm310, %v278
    %322 = vst.msk [vmem:[#allocation2 + $0x58] sm:$0xff] %vm310, %v284
    %323 = vst.msk [vmem:[#allocation2 + $0x60] sm:$0xff] %vm310, %v291
    %324 = vst.msk [vmem:[#allocation2 + $0x68] sm:$0xff] %vm310, %v297
    %325 = vst.msk [vmem:[#allocation2 + $0x70] sm:$0xff] %vm310, %v303
    %326 = vst.msk [vmem:[#allocation2 + $0x78] sm:$0xff] %vm310, %v309
  $region21: #{_aaf_levels.2} parent=0 // pred_fallthru
    _
  %v327 = vld [vmem:[#allocation2] sm:$0xff]
  %v328 = vld [vmem:[#allocation2 + $0x8] sm:$0xff]
  %v329 = vld [vmem:[#allocation2 + $0x10] sm:$0xff]
  %v330 = vld [vmem:[#allocation2 + $0x18] sm:$0xff]
  %v331 = vld [vmem:[#allocation2 + $0x20] sm:$0xff]
  %v332 = vld [vmem:[#allocation2 + $0x28] sm:$0xff]
  %v333 = vld [vmem:[#allocation2 + $0x30] sm:$0xff]
  %v334 = vld [vmem:[#allocation2 + $0x38] sm:$0xff]
  %v335 = vld [vmem:[#allocation2 + $0x40] sm:$0xff]
  %v336 = vld [vmem:[#allocation2 + $0x48] sm:$0xff]
  %v337 = vld [vmem:[#allocation2 + $0x50] sm:$0xff]
  %v338 = vld [vmem:[#allocation2 + $0x58] sm:$0xff]
  %v339 = vld [vmem:[#allocation2 + $0x60] sm:$0xff]
  %v340 = vld [vmem:[#allocation2 + $0x68] sm:$0xff]
  %v341 = vld [vmem:[#allocation2 + $0x70] sm:$0xff]
  %v342 = vld [vmem:[#allocation2 + $0x78] sm:$0xff]
  %v343 = vld [vmem:[%s0] sm:$0xff]
  %v344 = vld [vmem:[%s0 + $0x8] sm:$0xff]
  %v345 = vld [vmem:[%s0 + $0x10] sm:$0xff]
  %v346 = vld [vmem:[%s0 + $0x18] sm:$0xff]
  %v347 = vld [vmem:[%s0 + $0x20] sm:$0xff]
  %v348 = vld [vmem:[%s0 + $0x28] sm:$0xff]
  %v349 = vld [vmem:[%s0 + $0x30] sm:$0xff]
  %v350 = vld [vmem:[%s0 + $0x38] sm:$0xff]
  %v351 = vld [vmem:[%s0 + $0x40] sm:$0xff]
  %v352 = vld [vmem:[%s0 + $0x48] sm:$0xff]
  %v353 = vld [vmem:[%s0 + $0x50] sm:$0xff]
  %v354 = vld [vmem:[%s0 + $0x58] sm:$0xff]
  %v355 = vld [vmem:[%s0 + $0x60] sm:$0xff]
  %v356 = vld [vmem:[%s0 + $0x68] sm:$0xff]
  %v357 = vld [vmem:[%s0 + $0x70] sm:$0xff]
  %v358 = vld [vmem:[%s0 + $0x78] sm:$0xff]
  %360 = vset.pattern.permute.xlu0 0
  %361 = vperm.xlu0 %360, %v327
  %v362 = vpop.permute.xlu0 %361
  %365 = vset.pattern.permute.xlu0 0
  %366 = vperm.xlu0 %365, %v328
  %v367 = vpop.permute.xlu0 %366
  %370 = vset.pattern.permute.xlu0 0
  %371 = vperm.xlu0 %370, %v329
  %v372 = vpop.permute.xlu0 %371
  %375 = vset.pattern.permute.xlu0 0
  %376 = vperm.xlu0 %375, %v330
  %v377 = vpop.permute.xlu0 %376
  %380 = vset.pattern.permute.xlu0 0
  %381 = vperm.xlu0 %380, %v331
  %v382 = vpop.permute.xlu0 %381
  %385 = vset.pattern.permute.xlu0 0
  %386 = vperm.xlu0 %385, %v332
  %v387 = vpop.permute.xlu0 %386
  %390 = vset.pattern.permute.xlu0 0
  %391 = vperm.xlu0 %390, %v333
  %v392 = vpop.permute.xlu0 %391
  %395 = vset.pattern.permute.xlu0 0
  %396 = vperm.xlu0 %395, %v334
  %v397 = vpop.permute.xlu0 %396
  %400 = vset.pattern.permute.xlu0 0
  %401 = vperm.xlu0 %400, %v335
  %v402 = vpop.permute.xlu0 %401
  %405 = vset.pattern.permute.xlu0 0
  %406 = vperm.xlu0 %405, %v336
  %v407 = vpop.permute.xlu0 %406
  %410 = vset.pattern.permute.xlu0 0
  %411 = vperm.xlu0 %410, %v337
  %v412 = vpop.permute.xlu0 %411
  %415 = vset.pattern.permute.xlu0 0
  %416 = vperm.xlu0 %415, %v338
  %v417 = vpop.permute.xlu0 %416
  %420 = vset.pattern.permute.xlu0 0
  %421 = vperm.xlu0 %420, %v339
  %v422 = vpop.permute.xlu0 %421
  %425 = vset.pattern.permute.xlu0 0
  %426 = vperm.xlu0 %425, %v340
  %v427 = vpop.permute.xlu0 %426
  %430 = vset.pattern.permute.xlu0 0
  %431 = vperm.xlu0 %430, %v341
  %v432 = vpop.permute.xlu0 %431
  %435 = vset.pattern.permute.xlu0 0
  %436 = vperm.xlu0 %435, %v342
  %v437 = vpop.permute.xlu0 %436
  %v439 = vmul.f32 %v362, %v343
  %v440 = vmul.f32 %v362, %v344
  %v441 = vmul.f32 %v367, %v345
  %v442 = vmul.f32 %v367, %v346
  %v443 = vmul.f32 %v372, %v347
  %v444 = vmul.f32 %v372, %v348
  %v445 = vmul.f32 %v377, %v349
  %v446 = vmul.f32 %v377, %v350
  %v447 = vmul.f32 %v362, %v351
  %v448 = vmul.f32 %v362, %v352
  %v449 = vmul.f32 %v367, %v353
  %v450 = vmul.f32 %v367, %v354
  %v451 = vmul.f32 %v372, %v355
  %v452 = vmul.f32 %v372, %v356
  %v453 = vmul.f32 %v377, %v357
  %v454 = vmul.f32 %v377, %v358
  %v455 = vmul.f32 %v382, %v343
  %v456 = vmul.f32 %v382, %v344
  %v457 = vmul.f32 %v387, %v345
  %v458 = vmul.f32 %v387, %v346
  %v459 = vmul.f32 %v392, %v347
  %v460 = vmul.f32 %v392, %v348
  %v461 = vmul.f32 %v397, %v349
  %v462 = vmul.f32 %v397, %v350
  %v463 = vmul.f32 %v382, %v351
  %v464 = vmul.f32 %v382, %v352
  %v465 = vmul.f32 %v387, %v353
  %v466 = vmul.f32 %v387, %v354
  %v467 = vmul.f32 %v392, %v355
  %v468 = vmul.f32 %v392, %v356
  %v469 = vmul.f32 %v397, %v357
  %v470 = vmul.f32 %v397, %v358
  %v471 = vmul.f32 %v402, %v343
  %v472 = vmul.f32 %v402, %v344
  %v473 = vmul.f32 %v407, %v345
  %v474 = vmul.f32 %v407, %v346
  %v475 = vmul.f32 %v412, %v347
  %v476 = vmul.f32 %v412, %v348
  %v477 = vmul.f32 %v417, %v349
  %v478 = vmul.f32 %v417, %v350
  %v479 = vmul.f32 %v402, %v351
  %v480 = vmul.f32 %v402, %v352
  %v481 = vmul.f32 %v407, %v353
  %v482 = vmul.f32 %v407, %v354
  %v483 = vmul.f32 %v412, %v355
  %v484 = vmul.f32 %v412, %v356
  %v485 = vmul.f32 %v417, %v357
  %v486 = vmul.f32 %v417, %v358
  %v487 = vmul.f32 %v422, %v343
  %v488 = vmul.f32 %v422, %v344
  %v489 = vmul.f32 %v427, %v345
  %v490 = vmul.f32 %v427, %v346
  %v491 = vmul.f32 %v432, %v347
  %v492 = vmul.f32 %v432, %v348
  %v493 = vmul.f32 %v437, %v349
  %v494 = vmul.f32 %v437, %v350
  %v495 = vmul.f32 %v422, %v351
  %v496 = vmul.f32 %v422, %v352
  %v497 = vmul.f32 %v427, %v353
  %v498 = vmul.f32 %v427, %v354
  %v499 = vmul.f32 %v432, %v355
  %v500 = vmul.f32 %v432, %v356
  %v501 = vmul.f32 %v437, %v357
  %v502 = vmul.f32 %v437, %v358
  %v503 = vpack.c.bf16 %v440, %v439
  %v504 = vpack.c.bf16 %v442, %v441
  %v505 = vpack.c.bf16 %v444, %v443
  %v506 = vpack.c.bf16 %v446, %v445
  %v507 = vpack.c.bf16 %v448, %v447
  %v508 = vpack.c.bf16 %v450, %v449
  %v509 = vpack.c.bf16 %v452, %v451
  %v510 = vpack.c.bf16 %v454, %v453
  %v511 = vpack.c.bf16 %v456, %v455
  %v512 = vpack.c.bf16 %v458, %v457
  %v513 = vpack.c.bf16 %v460, %v459
  %v514 = vpack.c.bf16 %v462, %v461
  %v515 = vpack.c.bf16 %v464, %v463
  %v516 = vpack.c.bf16 %v466, %v465
  %v517 = vpack.c.bf16 %v468, %v467
  %v518 = vpack.c.bf16 %v470, %v469
  %v519 = vpack.c.bf16 %v472, %v471
  %v520 = vpack.c.bf16 %v474, %v473
  %v521 = vpack.c.bf16 %v476, %v475
  %v522 = vpack.c.bf16 %v478, %v477
  %v523 = vpack.c.bf16 %v480, %v479
  %v524 = vpack.c.bf16 %v482, %v481
  %v525 = vpack.c.bf16 %v484, %v483
  %v526 = vpack.c.bf16 %v486, %v485
  %v527 = vpack.c.bf16 %v488, %v487
  %v528 = vpack.c.bf16 %v490, %v489
  %v529 = vpack.c.bf16 %v492, %v491
  %v530 = vpack.c.bf16 %v494, %v493
  %v531 = vpack.c.bf16 %v496, %v495
  %v532 = vpack.c.bf16 %v498, %v497
  %v533 = vpack.c.bf16 %v500, %v499
  %v534 = vpack.c.bf16 %v502, %v501
  %535 = vst [vmem:[%s4] sm:$0xff] %v503
  %536 = vst [vmem:[%s4 + $0x8] sm:$0xff] %v504
  %537 = vst [vmem:[%s4 + $0x10] sm:$0xff] %v505
  %538 = vst [vmem:[%s4 + $0x18] sm:$0xff] %v506
  %539 = vst [vmem:[%s4 + $0x20] sm:$0xff] %v507
  %540 = vst [vmem:[%s4 + $0x28] sm:$0xff] %v508
  %541 = vst [vmem:[%s4 + $0x30] sm:$0xff] %v509
  %542 = vst [vmem:[%s4 + $0x38] sm:$0xff] %v510
  %543 = vst [vmem:[%s4 + $0x40] sm:$0xff] %v511
  %544 = vst [vmem:[%s4 + $0x48] sm:$0xff] %v512
  %545 = vst [vmem:[%s4 + $0x50] sm:$0xff] %v513
  %546 = vst [vmem:[%s4 + $0x58] sm:$0xff] %v514
  %547 = vst [vmem:[%s4 + $0x60] sm:$0xff] %v515
  %548 = vst [vmem:[%s4 + $0x68] sm:$0xff] %v516
  %549 = vst [vmem:[%s4 + $0x70] sm:$0xff] %v517
  %550 = vst [vmem:[%s4 + $0x78] sm:$0xff] %v518
  %551 = vst [vmem:[%s4 + $0x80] sm:$0xff] %v519
  %552 = vst [vmem:[%s4 + $0x88] sm:$0xff] %v520
  %553 = vst [vmem:[%s4 + $0x90] sm:$0xff] %v521
  %554 = vst [vmem:[%s4 + $0x98] sm:$0xff] %v522
  %555 = vst [vmem:[%s4 + $0xa0] sm:$0xff] %v523
  %556 = vst [vmem:[%s4 + $0xa8] sm:$0xff] %v524
  %557 = vst [vmem:[%s4 + $0xb0] sm:$0xff] %v525
  %558 = vst [vmem:[%s4 + $0xb8] sm:$0xff] %v526
  %559 = vst [vmem:[%s4 + $0xc0] sm:$0xff] %v527
  %560 = vst [vmem:[%s4 + $0xc8] sm:$0xff] %v528
  %561 = vst [vmem:[%s4 + $0xd0] sm:$0xff] %v529
  %562 = vst [vmem:[%s4 + $0xd8] sm:$0xff] %v530
  %563 = vst [vmem:[%s4 + $0xe0] sm:$0xff] %v531
  %564 = vst [vmem:[%s4 + $0xe8] sm:$0xff] %v532
  %565 = vst [vmem:[%s4 + $0xf0] sm:$0xff] %v533
  %566 = vst [vmem:[%s4 + $0xf8] sm:$0xff] %v534
  // Predicated region
  $region22: #{_aaf_levels.2} parent=0 // pred_check
    _
  $region23: #{_aaf_levels.2} parent=0 // pred_check_branch
    %568 = sbr.rel (0) target = $region25
  $region24: #{_aaf_levels.2} parent=0 // pred_region
    _
  $region25: #{_aaf_levels.2} parent=0 // pred_fallthru
    _
  // Predicated region
  $region26: #{_aaf_levels.2} parent=0 // pred_check
    _
  $region27: #{_aaf_levels.2} parent=0 // pred_check_branch
    %570 = sbr.rel (0) target = $region29
  $region28: #{_aaf_levels.2} parent=0 // pred_region
    _
  $region29: #{_aaf_levels.2} parent=0 // pred_fallthru
    _

</llo_original>
